<compile_context>
chip_gen: v6e
topology: v6e:2x2x1
jax: 0.10.0
libtpu: 0.0.40
codegen_flags: <defaults>
</compile_context>

<pallas_src>
import jax
import jax.numpy as jnp
import numpy as np
from jax.experimental import pallas as pl
from jax.experimental.pallas import tpu as pltpu


def _channel_attention_kernel(x_ref, w1t_ref, b1_ref, w2t_ref, b2_ref, o_ref):
    x = x_ref[...]                                     # (NB, C, HW), x dtype
    nb, _, hw = x.shape

    # --- pooling over the spatial (lane) axis; no full-tile f32 copy ---
    avg = jnp.sum(x, axis=2, dtype=jnp.float32) * (1.0 / hw)   # (NB, C) f32
    mx = jnp.max(x, axis=2).astype(jnp.float32)                # (NB, C) f32

    # --- shared MLP: both pooled vectors of all NB batches in one pass ---
    # (tiny matmuls; hidden under the tile DMA for this HBM-bound op)
    v = jnp.concatenate([avg, mx], axis=0)             # (2*NB, C) f32
    h = jnp.dot(v, w1t_ref[...],
                preferred_element_type=jnp.float32) + b1_ref[...]
    h = jnp.maximum(h, 0.0)                            # (2*NB, M)
    out = jnp.dot(h, w2t_ref[...],
                  preferred_element_type=jnp.float32) + b2_ref[...]  # (2*NB, C)

    att = out[:nb] + out[nb:]                          # (NB, C)
    scale = jax.nn.sigmoid(att).astype(x.dtype)        # (NB, C)

    o_ref[...] = x * scale[:, :, None]                 # broadcast over lanes


def _vmem_capacity_bytes():
    """Per-TensorCore VMEM capacity, generation-aware with safe fallbacks."""
    try:
        cap = getattr(pltpu.get_tpu_info(), "vmem_capacity_bytes", None)
        if cap:
            return int(cap)
    except Exception:
        pass
    try:
        kind = jax.devices()[0].device_kind.lower()
        if "v7" in kind or "7x" in kind:
            return 64 << 20
    except Exception:
        pass
    return 128 << 20


def _num_tensorcores():
    try:
        kind = jax.devices()[0].device_kind.lower()
        if "v7" in kind or "7x" in kind:
            return 2
    except Exception:
        pass
    return 1


def _choose_batches_per_step(B, C, hw, itemsize, tile_budget, num_cores):
    """Pick NB (a divisor of B): fill the 8 (f32) / 16 (bf16) vreg sublanes
    (NB*C a multiple of the pack) while keeping the x tile within the VMEM
    budget; grow further only while enough balanced grid steps remain
    (>= 2 per TensorCore, grid a multiple of the core count)."""
    row_pack = 16 if itemsize <= 2 else 8
    min_steps = 2 * num_cores
    best = 1
    for d in range(1, B + 1):
        if B % d:
            continue
        if d > 1 and d * C * hw * itemsize > tile_budget:
            break
        steps = B // d
        if (best * C) % row_pack != 0:
            best = d                       # still working on sublane fill
        elif ((d * C) % row_pack == 0 and steps >= min_steps
              and steps % num_cores == 0):
            best = d                       # amortize per-step overhead
    return best


def channel_attention(x, w1, b1, w2, b2):
    """x: (B, C, H, W). w1: (M, C), b1: (M,), w2: (C, M), b2: (C,) — the two
    Linear layers of the CBAM MLP. Output dtype == x dtype."""
    B, C, H, W = x.shape
    M = w1.shape[0]
    HW = H * W

    x_flat = x.reshape(B, C, HW)           # no pad: ragged tail -> masked vst

    itemsize = jnp.dtype(x.dtype).itemsize
    vmem_cap = _vmem_capacity_bytes()
    num_cores = _num_tensorcores()
    # ~12 MiB of x per step on 128 MiB parts, ~6.4 MiB on 64 MiB (v7x) parts.
    tile_budget = max(2 << 20, min(12 << 20, vmem_cap // 10))
    NB = _choose_batches_per_step(B, C, HW, itemsize, tile_budget, num_cores)
    grid = (B // NB,)

    # Pre-transposed f32 weights -> row-vector matmuls in the kernel
    # (identical math to PyTorch's v @ W.T + b).
    w1t = jnp.asarray(w1, jnp.float32).T           # (C, M)
    w2t = jnp.asarray(w2, jnp.float32).T           # (M, C)
    b1r = jnp.asarray(b1, jnp.float32).reshape(1, M)
    b2r = jnp.asarray(b2, jnp.float32).reshape(1, C)

    # VMEM budget: in/out tiles double-buffered, resident weights, plus the
    # f32 upcast temporary the sum reduction may materialize for sub-f32 x.
    tile_bytes = NB * C * HW * itemsize
    f32_tmp_bytes = NB * C * HW * 4 if itemsize < 4 else 0
    weight_bytes = 4 * (2 * C * M + M + C)
    vmem_need = 4 * tile_bytes + f32_tmp_bytes + 2 * weight_bytes + (1 << 20)
    vmem_limit = int(min(vmem_cap - (8 << 20), max(32 << 20, 2 * vmem_need)))

    out = pl.pallas_call(
        _channel_attention_kernel,
        out_shape=jax.ShapeDtypeStruct((B, C, HW), x.dtype),
        grid_spec=pltpu.PrefetchScalarGridSpec(
            num_scalar_prefetch=0,
            grid=grid,
            in_specs=[
                pl.BlockSpec((NB, C, HW), lambda b: (b, 0, 0)),
                pl.BlockSpec((C, M), lambda b: (0, 0)),
                pl.BlockSpec((1, M), lambda b: (0, 0)),
                pl.BlockSpec((M, C), lambda b: (0, 0)),
                pl.BlockSpec((1, C), lambda b: (0, 0)),
            ],
            out_specs=pl.BlockSpec((NB, C, HW), lambda b: (b, 0, 0)),
        ),
        compiler_params=pltpu.CompilerParams(
            dimension_semantics=("parallel",),
            vmem_limit_bytes=vmem_limit,
        ),
    )(x_flat, w1t, b1r, w2t, b2r)

    return out.reshape(B, C, H, W)


def channel_attention_ref(x, w1, b1, w2, b2):
    """Pure-JAX reference matching the PyTorch module."""
    avg = jnp.mean(x, axis=(2, 3))        # (B, C)
    mx = jnp.max(x, axis=(2, 3))          # (B, C)

    def mlp(v):
        h = jnp.maximum(v @ w1.T + b1, 0.0)
        return h @ w2.T + b2

    out = mlp(avg) + mlp(mx)              # (B, C)
    scale = jax.nn.sigmoid(out)[:, :, None, None]
    return x * scale


if __name__ == "__main__":
    # ChannelAttention(input_channels=4, reduction_ratio=16)
    # middle_channel = 4 // 16 = 0 -> falls back to input_channels = 4
    B, C, H, W = 2, 4, 16, 16
    M = C

    key = jax.random.PRNGKey(0)
    kx, k1, k2, k3, k4, kx2 = jax.random.split(key, 6)

    x = jax.random.normal(kx, (B, C, H, W), dtype=jnp.float32)

    bound1 = 1.0 / np.sqrt(C)
    w1 = jax.random.uniform(k1, (M, C), jnp.float32, -bound1, bound1)
    b1 = jax.random.uniform(k2, (M,), jnp.float32, -bound1, bound1)
    bound2 = 1.0 / np.sqrt(M)
    w2 = jax.random.uniform(k3, (C, M), jnp.float32, -bound2, bound2)
    b2 = jax.random.uniform(k4, (C,), jnp.float32, -bound2, bound2)

    # f32 path (tight tolerance against the reference)
    y = jax.block_until_ready(channel_attention(x, w1, b1, w2, b2))
    y_ref = channel_attention_ref(x, w1, b1, w2, b2)
    assert y.shape == (B, C, H, W)
    np.testing.assert_allclose(np.asarray(y), np.asarray(y_ref),
                               atol=1e-5, rtol=1e-5)

    # bf16 I/O path (halves HBM traffic; f32 accumulation in-kernel).
    # Note: the sigmoid scale is rounded to bf16 before the multiply, matching
    # PyTorch bf16 behavior; covered by the looser tolerance.
    x_bf = x.astype(jnp.bfloat16)
    y_bf = jax.block_until_ready(channel_attention(x_bf, w1, b1, w2, b2))
    y_bf_ref = channel_attention_ref(x_bf.astype(jnp.float32), w1, b1, w2, b2)
    np.testing.assert_allclose(np.asarray(y_bf.astype(jnp.float32)),
                               np.asarray(y_bf_ref), atol=2e-2, rtol=2e-2)

    # non-multiple-of-128 spatial dim exercises the ragged-tail (no-pad) path
    x_odd = jax.random.normal(kx2, (B, C, 10, 10), dtype=jnp.float32)
    y_odd = jax.block_until_ready(channel_attention(x_odd, w1, b1, w2, b2))
    y_odd_ref = channel_attention_ref(x_odd, w1, b1, w2, b2)
    np.testing.assert_allclose(np.asarray(y_odd), np.asarray(y_odd_ref),
                               atol=1e-5, rtol=1e-5)

    print("KERNEL_OK")
</pallas_src>

<mosaic_0001>
module attributes {stable_mosaic.version = 11 : i64} {
  func.func @_channel_attention_kernel(%arg0: i32, %arg1: memref<2x4x256xf32, #tpu.memory_space<vmem>>, %arg2: memref<4x4xf32, #tpu.memory_space<vmem>>, %arg3: memref<1x4xf32, #tpu.memory_space<vmem>>, %arg4: memref<4x4xf32, #tpu.memory_space<vmem>>, %arg5: memref<1x4xf32, #tpu.memory_space<vmem>>, %arg6: memref<2x4x256xf32, #tpu.memory_space<vmem>>) attributes {dimension_semantics = [#tpu.dimension_semantics<parallel>], iteration_bounds = array<i64: 1>, scalar_prefetch = 0 : i64, scratch_operands = 0 : i64, tpu.core_type = #tpu.core_type<tc>, window_params = [{transform_indices = @transform_0, window_bounds = array<i64: 2, 4, 256>}, {pipeline_mode = #tpu.pipeline_mode<synchronous>, transform_indices = @transform_1, window_bounds = array<i64: 4, 4>}, {pipeline_mode = #tpu.pipeline_mode<synchronous>, transform_indices = @transform_2, window_bounds = array<i64: 1, 4>}, {pipeline_mode = #tpu.pipeline_mode<synchronous>, transform_indices = @transform_3, window_bounds = array<i64: 4, 4>}, {pipeline_mode = #tpu.pipeline_mode<synchronous>, transform_indices = @transform_4, window_bounds = array<i64: 1, 4>}, {transform_indices = @transform_5, window_bounds = array<i64: 2, 4, 256>}]} {
    %c0 = arith.constant 0 : index
    %c0_0 = arith.constant 0 : index
    %c0_1 = arith.constant 0 : index
    %0 = vector.load %arg1[%c0, %c0_0, %c0_1] : memref<2x4x256xf32, #tpu.memory_space<vmem>>, vector<2x4x256xf32>
    %cst = arith.constant dense<0.000000e+00> : vector<2x4xf32>
    %1 = vector.multi_reduction <add>, %0, %cst [2] : vector<2x4x256xf32> to vector<2x4xf32>
    %cst_2 = arith.constant 3.906250e-03 : f32
    %2 = vector.broadcast %cst_2 : f32 to vector<2x4xf32>
    %3 = arith.mulf %1, %2 : vector<2x4xf32>
    %cst_3 = arith.constant dense<0xFF800000> : vector<2x4xf32>
    %4 = vector.multi_reduction <maximumf>, %0, %cst_3 [2] : vector<2x4x256xf32> to vector<2x4xf32>
    %5 = tpu.concatenate %3, %4 in 0 : vector<2x4xf32>, vector<2x4xf32> -> vector<4x4xf32>
    %c0_4 = arith.constant 0 : index
    %c0_5 = arith.constant 0 : index
    %6 = vector.load %arg2[%c0_4, %c0_5] : memref<4x4xf32, #tpu.memory_space<vmem>>, vector<4x4xf32>
    %cst_6 = arith.constant dense<0.000000e+00> : vector<4x4xf32>
    %7 = tpu.matmul %5, %6, %cst_6 {dimension_numbers = #tpu.dot_dimension_numbers<[1], [0], [0], [1], [0, 0, 1, 1], [], []>} : vector<4x4xf32>, vector<4x4xf32>, vector<4x4xf32> -> vector<4x4xf32>
    %c0_7 = arith.constant 0 : index
    %c0_8 = arith.constant 0 : index
    %8 = vector.load %arg3[%c0_7, %c0_8] : memref<1x4xf32, #tpu.memory_space<vmem>>, vector<1x4xf32>
    %9 = vector.broadcast %8 : vector<1x4xf32> to vector<4x4xf32>
    %10 = arith.addf %7, %9 : vector<4x4xf32>
    %cst_9 = arith.constant 0.000000e+00 : f32
    %11 = vector.broadcast %cst_9 : f32 to vector<4x4xf32>
    %12 = arith.maximumf %10, %11 : vector<4x4xf32>
    %c0_10 = arith.constant 0 : index
    %c0_11 = arith.constant 0 : index
    %13 = vector.load %arg4[%c0_10, %c0_11] : memref<4x4xf32, #tpu.memory_space<vmem>>, vector<4x4xf32>
    %cst_12 = arith.constant dense<0.000000e+00> : vector<4x4xf32>
    %14 = tpu.matmul %12, %13, %cst_12 {dimension_numbers = #tpu.dot_dimension_numbers<[1], [0], [0], [1], [0, 0, 1, 1], [], []>} : vector<4x4xf32>, vector<4x4xf32>, vector<4x4xf32> -> vector<4x4xf32>
    %c0_13 = arith.constant 0 : index
    %c0_14 = arith.constant 0 : index
    %15 = vector.load %arg5[%c0_13, %c0_14] : memref<1x4xf32, #tpu.memory_space<vmem>>, vector<1x4xf32>
    %16 = vector.broadcast %15 : vector<1x4xf32> to vector<4x4xf32>
    %17 = arith.addf %14, %16 : vector<4x4xf32>
    %18 = vector.extract_strided_slice %17 {offsets = [0, 0], sizes = [2, 4], strides = [1, 1]} : vector<4x4xf32> to vector<2x4xf32>
    %19 = vector.extract_strided_slice %17 {offsets = [2, 0], sizes = [2, 4], strides = [1, 1]} : vector<4x4xf32> to vector<2x4xf32>
    %20 = arith.addf %18, %19 : vector<2x4xf32>
    %21 = arith.negf %20 : vector<2x4xf32>
    %22 = math.exp %21 : vector<2x4xf32>
    %cst_15 = arith.constant 1.000000e+00 : f32
    %23 = vector.broadcast %cst_15 : f32 to vector<2x4xf32>
    %24 = arith.addf %23, %22 : vector<2x4xf32>
    %25 = arith.divf %23, %24 : vector<2x4xf32>
    %26 = vector.shape_cast %25 : vector<2x4xf32> to vector<2x4x1xf32>
    %27 = vector.broadcast %26 : vector<2x4x1xf32> to vector<2x4x256xf32>
    %28 = arith.mulf %0, %27 : vector<2x4x256xf32>
    %c0_16 = arith.constant 0 : index
    %c0_17 = arith.constant 0 : index
    %c0_18 = arith.constant 0 : index
    %29 = vector.load %arg6[%c0_16, %c0_17, %c0_18] : memref<2x4x256xf32, #tpu.memory_space<vmem>>, vector<2x4x256xf32>
    tpu.vector_store %arg6[%c0_16, %c0_17, %c0_18], %28 {strides = array<i32>} : memref<2x4x256xf32, #tpu.memory_space<vmem>>, vector<2x4x256xf32>,
    return
  }
  func.func @transform_0(%arg0: i32) -> (i32, i32, i32) {
    %c0_i32 = arith.constant 0 : i32
    %c0_i32_0 = arith.constant 0 : i32
    %c0_i32_1 = arith.constant 0 : i32
    return %arg0, %c0_i32, %c0_i32_0 : i32, i32, i32
  }
  func.func @transform_1(%arg0: i32) -> (i32, i32) {
    %c0_i32 = arith.constant 0 : i32
    %c0_i32_0 = arith.constant 0 : i32
    %c0_i32_1 = arith.constant 0 : i32
    return %c0_i32, %c0_i32_0 : i32, i32
  }
  func.func @transform_2(%arg0: i32) -> (i32, i32) {
    %c0_i32 = arith.constant 0 : i32
    %c0_i32_0 = arith.constant 0 : i32
    %c0_i32_1 = arith.constant 0 : i32
    return %c0_i32, %c0_i32_0 : i32, i32
  }
  func.func @transform_3(%arg0: i32) -> (i32, i32) {
    %c0_i32 = arith.constant 0 : i32
    %c0_i32_0 = arith.constant 0 : i32
    %c0_i32_1 = arith.constant 0 : i32
    return %c0_i32, %c0_i32_0 : i32, i32
  }
  func.func @transform_4(%arg0: i32) -> (i32, i32) {
    %c0_i32 = arith.constant 0 : i32
    %c0_i32_0 = arith.constant 0 : i32
    %c0_i32_1 = arith.constant 0 : i32
    return %c0_i32, %c0_i32_0 : i32, i32
  }
  func.func @transform_5(%arg0: i32) -> (i32, i32, i32) {
    %c0_i32 = arith.constant 0 : i32
    %c0_i32_0 = arith.constant 0 : i32
    %c0_i32_1 = arith.constant 0 : i32
    return %arg0, %c0_i32, %c0_i32_0 : i32, i32, i32
  }
}

</mosaic_0001>

<llo_original>
// kernel: tpu_custom_call.1
$region0: #{tpu_custom_call.1}
  #allocation0 [shape = 'u32[]', space=smem, size = 0x4, offset = 0x4, fixed_abs, tag = 'smem constant byte address 0x4 - core index']
  #allocation1 [shape = 'u32[144,128]{1,0:T(1,128)}', space=vmem, size = 0x12000, scoped, tag = 'internal scratch']
  %s0 = inlined_call_operand.hbm [shape: f32[2,4,256], index: 0, kind: input, shape index: {}]
  %s1 = inlined_call_operand.hbm [shape: f32[4,4], index: 1, kind: input, shape index: {}]
  %s2 = inlined_call_operand.vmem [shape: f32[1,4], index: 2, kind: input, shape index: {}]
  %s3 = inlined_call_operand.vmem [shape: f32[4,4], index: 3, kind: input, shape index: {}]
  %s4 = inlined_call_operand.vmem [shape: f32[1,4], index: 4, kind: input, shape index: {}]
  %s5 = inlined_call_operand.hbm [shape: f32[2,4,256], index: 5, kind: output, shape index: {}]
  %s6 = sld [smem:[#allocation0]]
  $region38: #{tpu_custom_call.1} parent=0
    _
  %s8 = ssub.s32 1, %s6
  %s9 = scalar_select 0, %s8, %s6
  $region1: #{tpu_custom_call.1} parent=0
    #allocation2 [shape = 'u8[8192]{0}', space=vmem, size = 0x2000, scoped, tag = 'input window, operand 0, single buffered']
    #allocation3 [shape = 's32[1]{0}', space=sflag, size = 0x4, scoped, tag = 'scoped memory for tpu_custom_call.1']
    #allocation4 [shape = 's32[1]{0}', space=sflag, size = 0x4, scoped, tag = 'scoped memory for tpu_custom_call.1']
    #allocation5 [shape = 'u8[2048]{0}', space=vmem, size = 0x800, scoped, tag = 'input window, operand 1, single buffered']
    #allocation6 [shape = 's32[1]{0}', space=sflag, size = 0x4, scoped, tag = 'scoped memory for tpu_custom_call.1']
    #allocation7 [shape = 'u8[8192]{0}', space=vmem, size = 0x2000, scoped, tag = 'output window, operand 0, single buffered']
    %10 = vsyncpa [#allocation3], 0
    %11 = vsyncpa [#allocation6], 0
    %12 = vsyncpa [#allocation4], 0
    // Predicated region
    $region2: #{tpu_custom_call.1} parent=1 // pred_check
      _
    $region3: #{tpu_custom_call.1} parent=1 // pred_check_branch
      %14 = sbr.rel (0) target = $region5
    $region4: #{tpu_custom_call.1} parent=1 // pred_region
      %s16 = ssub.s32 256, 256
      %17 = vsyncadd [#allocation3], %s16
      %s18 = sshll.u32 [#allocation2], 4
      %s19 = int_to_ptr.vmem [resolvable:$true] %s18
      %24 = dma.hbm_to_vmem [thread:$0]  %s0, 256, %s19, [#allocation3], 128, 128, 8
    $region5: #{tpu_custom_call.1} parent=1 // pred_fallthru
      _
    // Predicated region
    $region6: #{tpu_custom_call.1} parent=1 // pred_check
      _
    $region7: #{tpu_custom_call.1} parent=1 // pred_check_branch
      %26 = sbr.rel (0) target = $region9
    $region8: #{tpu_custom_call.1} parent=1 // pred_region
      %s28 = ssub.s32 64, 64
      %29 = vsyncadd [#allocation6], %s28
      %s31 = sshll.u32 [#allocation5], 4
      %s32 = int_to_ptr.vmem [resolvable:$true] %s31
      %34 = dma.hbm_to_vmem [thread:$0]  %s1, 64, %s32, [#allocation6]
    $region9: #{tpu_custom_call.1} parent=1 // pred_fallthru
      _
    // Predicated region
    $region10: #{tpu_custom_call.1} parent=1 // pred_check
      _
    $region11: #{tpu_custom_call.1} parent=1 // pred_check_branch
      %36 = sbr.rel (0) target = $region13
    $region12: #{tpu_custom_call.1} parent=1 // pred_region
      _
    $region13: #{tpu_custom_call.1} parent=1 // pred_fallthru
      _
    // Predicated region
    $region14: #{tpu_custom_call.1} parent=1 // pred_check
      _
    $region15: #{tpu_custom_call.1} parent=1 // pred_check_branch
      %38 = sbr.rel (0) target = $region17
    $region16: #{tpu_custom_call.1} parent=1 // pred_region
      _
    $region17: #{tpu_custom_call.1} parent=1 // pred_fallthru
      _
    // Predicated region
    $region18: #{tpu_custom_call.1} parent=1 // pred_check
      _
    $region19: #{tpu_custom_call.1} parent=1 // pred_check_branch
      %40 = sbr.rel (0) target = $region21
    $region20: #{tpu_custom_call.1} parent=1 // pred_region
      _
    $region21: #{tpu_custom_call.1} parent=1 // pred_fallthru
      _
    // Predicated region
    $region22: #{tpu_custom_call.1} parent=1 // pred_check
      _
    $region23: #{tpu_custom_call.1} parent=1 // pred_check_branch
      %42 = sbr.rel (0) target = $region25
    $region24: #{tpu_custom_call.1} parent=1 // pred_region
      %43 = dma.done [#allocation3], 256
    $region25: #{tpu_custom_call.1} parent=1 // pred_fallthru
      _
    // Predicated region
    $region26: #{tpu_custom_call.1} parent=1 // pred_check
      _
    $region27: #{tpu_custom_call.1} parent=1 // pred_check_branch
      %45 = sbr.rel (0) target = $region29
    $region28: #{tpu_custom_call.1} parent=1 // pred_region
      %46 = dma.done [#allocation6], 64
    $region29: #{tpu_custom_call.1} parent=1 // pred_fallthru
      _
    %v47 = vld [vmem:[#allocation2] sm:$0xff]
    %v48 = vld [vmem:[#allocation2 + $0x8] sm:$0xff]
    %v51 = vcombine.high %v47, %v47
    %v52 = vcombine.high %v48, %v48
    %vm55 = vcmask 1043456
    %v56 = vsel %vm55, %v47, 0.0
    %v57 = vsel %vm55, %v51, 0.0
    %v58 = vadd.f32 %v56, %v57
    %59 = vadd.xlane.f32.xlu0 %v58
    %v60 = vpop.xlane.xlu0 %59
    %v61 = vsel %vm55, %v48, 0.0
    %v62 = vsel %vm55, %v52, 0.0
    %v63 = vadd.f32 %v61, %v62
    %64 = vadd.xlane.f32.xlu0 %v63
    %v65 = vpop.xlane.xlu0 %64
    %v66 = vmul.f32 %v60, 0.00390625
    %v67 = vmul.f32 %v65, 0.00390625
    %v68 = vsel %vm55, %v47, -inf
    %v69 = vsel %vm55, %v51, -inf
    %v70 = vmax.f32 %v68, %v69
    %71 = vmax.xlane.f32.xlu0 %v70
    %v72 = vpop.xlane.xlu0 %71
    %v73 = vsel %vm55, %v48, -inf
    %v74 = vsel %vm55, %v52, -inf
    %v75 = vmax.f32 %v73, %v74
    %76 = vmax.xlane.f32.xlu0 %v75
    %v77 = vpop.xlane.xlu0 %76
    %v80 = vlaneseq
    %v81 = vand.u32 %v80, 127
    %v82 = vlaneseq
    %v83 = vshrl.u32 %v82, 7
    %v84 = vsub.s32 %v81, %v83
    %v85 = vrot.slane %v66, %v84
    %v86 = vlaneseq
    %v87 = vshrl.u32 %v86, 7
    %v88 = vsub.s32 %v81, %v87
    %v89 = vrot.slane %v67, %v88
    %vm90 = vcmask 1041409
    %v91 = vsel %vm90, %v89, %v85
    %v95 = vlaneseq
    %v96 = vshrl.u32 %v95, 7
    %v97 = vsub.s32 %v81, %v96
    %v98 = vrot.slane %v72, %v97
    %v99 = vlaneseq
    %v100 = vshrl.u32 %v99, 7
    %v101 = vsub.s32 %v81, %v100
    %v102 = vrot.slane %v77, %v101
    %vm103 = vcmask 1043459
    %v104 = vsel %vm103, %v102, %v98
    %vm106 = vcmask 1041408
    %v107 = vsel %vm106, %v91, %v104
    %v108 = vld [vmem:[#allocation5] sm:$0xf]
    %v109 = vld [vmem:[%s2] sm:$0x1]
    %v111 = vlaneseq
    %v112 = vshrl.u32 %v111, 7
    %v113 = vsub.s32 0, %v112
    %v114 = vrot.slane %v109, %v113
    %vm116 = vcmask 31744
    %v118 = vsel %vm116, %v107, 0
    %v121 = vsel %vm55, %v108, 0
    %123 = vmatprep.subr.mxu0 0.0
    %124 = vmatpush1.msra.mxu0 0.0
    %125 = vmatprep.subr.mxu0 0.0
    %126 = vmatpush1.msra.mxu0 0.0
    %127 = vmatprep.subr.mxu0 0.0
    %128 = vmatpush1.msra.mxu0 0.0
    %129 = vmatprep.subr.mxu0 0.0
    %130 = vmatpush1.msra.mxu0 0.0
    %131 = vmatprep.subr.mxu0 0.0
    %132 = vmatpush1.msra.mxu0 0.0
    %133 = vmatprep.subr.mxu0 0.0
    %134 = vmatpush1.msra.mxu0 0.0
    %135 = vmatprep.subr.mxu0 0.0
    %136 = vmatpush1.msra.mxu0 0.0
    %137 = vmatprep.subr.mxu0 0.0
    %138 = vmatpush1.msra.mxu0 0.0
    %139 = vmatprep.subr.mxu0 0.0
    %140 = vmatpush1.msra.mxu0 0.0
    %141 = vmatprep.subr.mxu0 0.0
    %142 = vmatpush1.msra.mxu0 0.0
    %143 = vmatprep.subr.mxu0 0.0
    %144 = vmatpush1.msra.mxu0 0.0
    %145 = vmatprep.subr.mxu0 0.0
    %146 = vmatpush1.msra.mxu0 0.0
    %147 = vmatprep.subr.mxu0 0.0
    %148 = vmatpush1.msra.mxu0 0.0
    %149 = vmatprep.subr.mxu0 0.0
    %150 = vmatpush1.msra.mxu0 0.0
    %151 = vmatprep.subr.mxu0 0.0
    %152 = vmatpush1.msra.mxu0 0.0
    %153 = vmatprep.subr.mxu0 0.0
    %154 = vmatpush1.msra.mxu0 %v121
    %155 = vmatprep.subr.mxu0 0.0
    %156 = vmatpush2.msra.mxu0 0.0
    %157 = vmatprep.subr.mxu0 0.0
    %158 = vmatpush2.msra.mxu0 0.0
    %159 = vmatprep.subr.mxu0 0.0
    %160 = vmatpush2.msra.mxu0 0.0
    %161 = vmatprep.subr.mxu0 0.0
    %162 = vmatpush2.msra.mxu0 0.0
    %163 = vmatprep.subr.mxu0 0.0
    %164 = vmatpush2.msra.mxu0 0.0
    %165 = vmatprep.subr.mxu0 0.0
    %166 = vmatpush2.msra.mxu0 0.0
    %167 = vmatprep.subr.mxu0 0.0
    %168 = vmatpush2.msra.mxu0 0.0
    %169 = vmatprep.subr.mxu0 0.0
    %170 = vmatpush2.msra.mxu0 0.0
    %171 = vmatprep.subr.mxu0 0.0
    %172 = vmatpush2.msra.mxu0 0.0
    %173 = vmatprep.subr.mxu0 0.0
    %174 = vmatpush2.msra.mxu0 0.0
    %175 = vmatprep.subr.mxu0 0.0
    %176 = vmatpush2.msra.mxu0 0.0
    %177 = vmatprep.subr.mxu0 0.0
    %178 = vmatpush2.msra.mxu0 0.0
    %179 = vmatprep.subr.mxu0 0.0
    %180 = vmatpush2.msra.mxu0 0.0
    %181 = vmatprep.subr.mxu0 0.0
    %182 = vmatpush2.msra.mxu0 0.0
    %183 = vmatprep.subr.mxu0 0.0
    %184 = vmatpush2.msra.mxu0 0.0
    %185 = vmatprep.subr.mxu0 0.0
    %186 = vmatpush2.msra.mxu0 0.0
    %187 = vmatprep.mubr.f32.mxu0 0.0
    %188 = vmatmul.mubr.f32.gmra.mxu0 %v118
    %v189 = vpop.f32.mrf.mxu0
    %v190 = vadd.f32 %v114, %v189
    %v191 = vpop.f32.mrf.mxu0
    %192 = vdwg.mxu0
    %v193 = vmax.f32 %v190, 0.0
    %v194 = vld [vmem:[%s3] sm:$0xf]
    %v195 = vld [vmem:[%s4] sm:$0x1]
    %v197 = vlaneseq
    %v198 = vshrl.u32 %v197, 7
    %v199 = vsub.s32 0, %v198
    %v200 = vrot.slane %v195, %v199
    %v203 = vsel %vm116, %v193, 0
    %v206 = vsel %vm55, %v194, 0
    %208 = vmatprep.subr.mxu0 0.0
    %209 = vmatpush1.msra.mxu0 0.0
    %210 = vmatprep.subr.mxu0 0.0
    %211 = vmatpush1.msra.mxu0 0.0
    %212 = vmatprep.subr.mxu0 0.0
    %213 = vmatpush1.msra.mxu0 0.0
    %214 = vmatprep.subr.mxu0 0.0
    %215 = vmatpush1.msra.mxu0 0.0
    %216 = vmatprep.subr.mxu0 0.0
    %217 = vmatpush1.msra.mxu0 0.0
    %218 = vmatprep.subr.mxu0 0.0
    %219 = vmatpush1.msra.mxu0 0.0
    %220 = vmatprep.subr.mxu0 0.0
    %221 = vmatpush1.msra.mxu0 0.0
    %222 = vmatprep.subr.mxu0 0.0
    %223 = vmatpush1.msra.mxu0 0.0
    %224 = vmatprep.subr.mxu0 0.0
    %225 = vmatpush1.msra.mxu0 0.0
    %226 = vmatprep.subr.mxu0 0.0
    %227 = vmatpush1.msra.mxu0 0.0
    %228 = vmatprep.subr.mxu0 0.0
    %229 = vmatpush1.msra.mxu0 0.0
    %230 = vmatprep.subr.mxu0 0.0
    %231 = vmatpush1.msra.mxu0 0.0
    %232 = vmatprep.subr.mxu0 0.0
    %233 = vmatpush1.msra.mxu0 0.0
    %234 = vmatprep.subr.mxu0 0.0
    %235 = vmatpush1.msra.mxu0 0.0
    %236 = vmatprep.subr.mxu0 0.0
    %237 = vmatpush1.msra.mxu0 0.0
    %238 = vmatprep.subr.mxu0 0.0
    %239 = vmatpush1.msra.mxu0 %v206
    %240 = vmatprep.subr.mxu0 0.0
    %241 = vmatpush2.msra.mxu0 0.0
    %242 = vmatprep.subr.mxu0 0.0
    %243 = vmatpush2.msra.mxu0 0.0
    %244 = vmatprep.subr.mxu0 0.0
    %245 = vmatpush2.msra.mxu0 0.0
    %246 = vmatprep.subr.mxu0 0.0
    %247 = vmatpush2.msra.mxu0 0.0
    %248 = vmatprep.subr.mxu0 0.0
    %249 = vmatpush2.msra.mxu0 0.0
    %250 = vmatprep.subr.mxu0 0.0
    %251 = vmatpush2.msra.mxu0 0.0
    %252 = vmatprep.subr.mxu0 0.0
    %253 = vmatpush2.msra.mxu0 0.0
    %254 = vmatprep.subr.mxu0 0.0
    %255 = vmatpush2.msra.mxu0 0.0
    %256 = vmatprep.subr.mxu0 0.0
    %257 = vmatpush2.msra.mxu0 0.0
    %258 = vmatprep.subr.mxu0 0.0
    %259 = vmatpush2.msra.mxu0 0.0
    %260 = vmatprep.subr.mxu0 0.0
    %261 = vmatpush2.msra.mxu0 0.0
    %262 = vmatprep.subr.mxu0 0.0
    %263 = vmatpush2.msra.mxu0 0.0
    %264 = vmatprep.subr.mxu0 0.0
    %265 = vmatpush2.msra.mxu0 0.0
    %266 = vmatprep.subr.mxu0 0.0
    %267 = vmatpush2.msra.mxu0 0.0
    %268 = vmatprep.subr.mxu0 0.0
    %269 = vmatpush2.msra.mxu0 0.0
    %270 = vmatprep.subr.mxu0 0.0
    %271 = vmatpush2.msra.mxu0 0.0
    %272 = vmatprep.mubr.f32.mxu0 0.0
    %273 = vmatmul.mubr.f32.gmra.mxu0 %v203
    %v274 = vpop.f32.mrf.mxu0
    %v275 = vadd.f32 %v200, %v274
    %v276 = vpop.f32.mrf.mxu0
    %277 = vdwg.mxu0
    %v279 = vrot.slane %v275, 2
    %v281 = vadd.f32 %v275, %v279
    %v282 = vxor.u32 %v281, 2147483648
    %v283 = vmul.f32 %v282, 1.442695
    %v284 = vpow.pop %v283
    %v285 = vadd.f32 %v284, 1.0
    %v286 = vrcp.pop %v285
    %v287 = vmul.f32 1.0, %v286
    %v288 = vlaneseq
    %v289 = vshrl.u32 %v288, 7
    %v290 = vsub.s32 0, %v289
    %v291 = vrot.slane %v287, %v290
    %293 = vbcast.lane.b32.xlu0 %v291, 256
    %v294 = vpop.permute.xlu0 %293
    %v295 = vlaneseq
    %v296 = vshrl.u32 %v295, 7
    %v297 = vsub.s32 1, %v296
    %v298 = vrot.slane %v287, %v297
    %300 = vbcast.lane.b32.xlu0 %v298, 256
    %v301 = vpop.permute.xlu0 %300
    %v305 = vunpack.c.l.s4 839922192
    %v306 = vunpack.c.0.s8 %v305
    %v307 = vlaneseq
    %v308 = vshrl.u32 %v307, 7
    %v309 = vsub.s32 %v306, %v308
    %v310 = vrot.slane %v294, %v309
    %v312 = vunpack.c.l.s4 839922192
    %v313 = vunpack.c.0.s8 %v312
    %v314 = vlaneseq
    %v315 = vshrl.u32 %v314, 7
    %v316 = vsub.s32 %v313, %v315
    %v317 = vrot.slane %v301, %v316
    %v320 = vmul.f32 %v47, %v310
    %v321 = vmul.f32 %v48, %v317
    %322 = vst [vmem:[#allocation7] sm:$0xff] %v320
    %323 = vst [vmem:[#allocation7 + $0x8] sm:$0xff] %v321
    // Predicated region
    $region30: #{tpu_custom_call.1} parent=1 // pred_check
      _
    $region31: #{tpu_custom_call.1} parent=1 // pred_check_branch
      %325 = sbr.rel (0) target = $region33
    $region32: #{tpu_custom_call.1} parent=1 // pred_region
      %s327 = ssub.s32 256, 256
      %328 = vsyncadd [#allocation4], %s327
      %s329 = sshll.u32 [#allocation7], 4
      %s330 = int_to_ptr.vmem [resolvable:$true] %s329
      %335 = dma.vmem_to_hbm [thread:$0]  %s330, 256, %s5, [#allocation4], 128, 128, 8
    $region33: #{tpu_custom_call.1} parent=1 // pred_fallthru
      _
    // Predicated region
    $region34: #{tpu_custom_call.1} parent=1 // pred_check
      _
    $region35: #{tpu_custom_call.1} parent=1 // pred_check_branch
      %337 = sbr.rel (0) target = $region37
    $region36: #{tpu_custom_call.1} parent=1 // pred_region
      %338 = dma.done [#allocation4], 256
    $region37: #{tpu_custom_call.1} parent=1 // pred_fallthru
      _
    %339 = vsyncpa [#allocation3], 1
    %340 = vsyncpa [#allocation6], 1
    %341 = vsyncpa [#allocation4], 1

</llo_original>
